<compile_context>
chip_gen: v6e
topology: v6e:2x2x1
jax: 0.10.0
libtpu: 0.0.40
codegen_flags: <defaults>
</compile_context>

<pallas_src>
import functools

import jax
import jax.numpy as jnp
from jax.experimental import pallas as pl
from jax.experimental.pallas import tpu as pltpu


_LANE = 128  # TPU lane width; the 1-wide head is padded to this so the final store is unmasked.


def _fused_mlp_kernel(*refs, num_layers: int):
    """Whole MLP for one batch tile.

    refs = (x_ref, w0, b0, w1, b1, ..., w_{L-1}, b_{L-1}, o_ref)
      x_ref : (tm, in_f)
      w_l   : (fin_l, fout_l)   resident in VMEM, constant across the grid
      b_l   : (1, fout_l)
      o_ref : (tm, _LANE)       lane-dense padded-head output
    Intermediate activations stay in vregs/VMEM.
    """
    x_ref = refs[0]
    o_ref = refs[-1]
    act = x_ref[...].astype(jnp.float32)
    for l in range(num_layers):
        w = refs[1 + 2 * l][...].astype(jnp.float32)
        b = refs[2 + 2 * l][...].astype(jnp.float32)
        act = jnp.dot(act, w, preferred_element_type=jnp.float32) + b
        if l < num_layers - 1:          # ReLU on hidden layers only
            act = jnp.maximum(act, 0.0)
    o_ref[...] = act.astype(o_ref.dtype)


def _round_up(v, m):
    return ((v + m - 1) // m) * m


def mlp_forward(x, params, *, tm=256):
    """Fused MLP forward pass: one pallas_call, grid only over the batch axis."""
    n, in_f = x.shape
    num_layers = len(params)

    # Zero-pad the 1-wide head to _LANE output columns -> dense (unmasked) final stores.
    w_last, b_last = params[-1]
    out_f = w_last.shape[1]
    w_last_p = jnp.pad(w_last, ((0, 0), (0, _LANE - out_f)))
    b_last_p = jnp.pad(b_last, ((0, _LANE - out_f),))
    layers = list(params[:-1]) + [(w_last_p, b_last_p)]

    # Batch tile: big enough to amortize per-grid-step overhead; clamped so tiny
    # batches still yield a legal (multiple-of-8) sublane block.
    tm_eff = min(tm, _round_up(max(n, 1), 8))
    grid = (pl.cdiv(n, tm_eff),)

    # Flattened operand list: x, then (w, b) per layer (bias reshaped to 2-D).
    operands = [x]
    in_specs = [pl.BlockSpec((tm_eff, in_f), lambda i: (i, 0))]
    for (w, b) in layers:
        fin, fout = w.shape
        operands.append(w)
        in_specs.append(pl.BlockSpec((fin, fout), lambda i: (0, 0)))
        operands.append(b.reshape(1, fout))
        in_specs.append(pl.BlockSpec((1, fout), lambda i: (0, 0)))

    out_specs = pl.BlockSpec((tm_eff, _LANE), lambda i: (i, 0))
    out_shape = jax.ShapeDtypeStruct((n, _LANE), x.dtype)

    # Advisory cost hint so XLA doesn't mis-schedule this near-zero-cost call.
    flops = 2 * n * sum(w.shape[0] * w.shape[1] for (w, _) in layers)
    bytes_accessed = (
        x.size * x.dtype.itemsize
        + sum(w.size * w.dtype.itemsize + b.size * b.dtype.itemsize for (w, b) in layers)
        + n * _LANE * x.dtype.itemsize
    )
    cost = pl.CostEstimate(flops=int(flops), transcendentals=0,
                           bytes_accessed=int(bytes_accessed))

    y_padded = pl.pallas_call(
        functools.partial(_fused_mlp_kernel, num_layers=num_layers),
        out_shape=out_shape,
        grid_spec=pltpu.PrefetchScalarGridSpec(
            num_scalar_prefetch=0,
            grid=grid,
            in_specs=in_specs,
            out_specs=out_specs,
        ),
        compiler_params=pltpu.CompilerParams(
            dimension_semantics=("parallel",),
        ),
        cost_estimate=cost,
    )(*operands)

    return y_padded[:, :out_f]


def init_mlp_params(hidden_sizes, key):
    """Deterministic init mirroring the PyTorch module's layer shapes:
    Linear(2, h0), Linear(h0, h1), ..., Linear(h_last, 1)."""
    dims_in = [2] + hidden_sizes
    dims_out = hidden_sizes + [1]
    params = []
    for fin, fout in zip(dims_in, dims_out):
        key, kw, kb = jax.random.split(key, 3)
        bound = 1.0 / jnp.sqrt(fin)  # matches PyTorch default uniform init range
        w = jax.random.uniform(kw, (fin, fout), jnp.float32, -bound, bound)
        b = jax.random.uniform(kb, (fout,), jnp.float32, -bound, bound)
        params.append((w, b))
    return params


if __name__ == "__main__":
    key = jax.random.PRNGKey(0)
    hidden_sizes = [32, 32]
    batch = 8

    kx, kp = jax.random.split(key)
    x = jax.random.normal(kx, (batch, 2), jnp.float32)
    params = init_mlp_params(hidden_sizes, kp)

    out = jax.jit(mlp_forward)(x, params)
    out = jax.block_until_ready(out)

    # Pure-JAX reference check.
    ref = x
    for w, b in params[:-1]:
        ref = jax.nn.relu(ref @ w + b)
    ref = ref @ params[-1][0] + params[-1][1]
    assert out.shape == (batch, 1)
    assert jnp.allclose(out, ref, atol=1e-5, rtol=1e-5)

    print("KERNEL_OK")
</pallas_src>

<mosaic_0001>
module attributes {stable_mosaic.version = 11 : i64} {
  func.func @_fused_mlp_kernel(%arg0: i32, %arg1: memref<8x2xf32, #tpu.memory_space<vmem>>, %arg2: memref<2x32xf32, #tpu.memory_space<vmem>>, %arg3: memref<1x32xf32, #tpu.memory_space<vmem>>, %arg4: memref<32x32xf32, #tpu.memory_space<vmem>>, %arg5: memref<1x32xf32, #tpu.memory_space<vmem>>, %arg6: memref<32x128xf32, #tpu.memory_space<vmem>>, %arg7: memref<1x128xf32, #tpu.memory_space<vmem>>, %arg8: memref<8x128xf32, #tpu.memory_space<vmem>>) attributes {dimension_semantics = [#tpu.dimension_semantics<parallel>], iteration_bounds = array<i64: 1>, scalar_prefetch = 0 : i64, scratch_operands = 0 : i64, tpu.core_type = #tpu.core_type<tc>, window_params = [{transform_indices = @transform_0, window_bounds = array<i64: 8, 2>}, {pipeline_mode = #tpu.pipeline_mode<synchronous>, transform_indices = @transform_1, window_bounds = array<i64: 2, 32>}, {pipeline_mode = #tpu.pipeline_mode<synchronous>, transform_indices = @transform_2, window_bounds = array<i64: 1, 32>}, {pipeline_mode = #tpu.pipeline_mode<synchronous>, transform_indices = @transform_3, window_bounds = array<i64: 32, 32>}, {pipeline_mode = #tpu.pipeline_mode<synchronous>, transform_indices = @transform_4, window_bounds = array<i64: 1, 32>}, {pipeline_mode = #tpu.pipeline_mode<synchronous>, transform_indices = @transform_5, window_bounds = array<i64: 32, 128>}, {pipeline_mode = #tpu.pipeline_mode<synchronous>, transform_indices = @transform_6, window_bounds = array<i64: 1, 128>}, {transform_indices = @transform_7, window_bounds = array<i64: 8, 128>}]} {
    %c0 = arith.constant 0 : index
    %c0_0 = arith.constant 0 : index
    %0 = vector.load %arg1[%c0, %c0_0] : memref<8x2xf32, #tpu.memory_space<vmem>>, vector<8x2xf32>
    %c0_1 = arith.constant 0 : index
    %c0_2 = arith.constant 0 : index
    %1 = vector.load %arg2[%c0_1, %c0_2] : memref<2x32xf32, #tpu.memory_space<vmem>>, vector<2x32xf32>
    %c0_3 = arith.constant 0 : index
    %c0_4 = arith.constant 0 : index
    %2 = vector.load %arg3[%c0_3, %c0_4] : memref<1x32xf32, #tpu.memory_space<vmem>>, vector<1x32xf32>
    %cst = arith.constant dense<0.000000e+00> : vector<8x32xf32>
    %3 = tpu.matmul %0, %1, %cst {dimension_numbers = #tpu.dot_dimension_numbers<[1], [0], [0], [1], [0, 0, 1, 1], [], []>} : vector<8x2xf32>, vector<2x32xf32>, vector<8x32xf32> -> vector<8x32xf32>
    %4 = vector.broadcast %2 : vector<1x32xf32> to vector<8x32xf32>
    %5 = arith.addf %3, %4 : vector<8x32xf32>
    %cst_5 = arith.constant 0.000000e+00 : f32
    %6 = vector.broadcast %cst_5 : f32 to vector<8x32xf32>
    %7 = arith.maximumf %5, %6 : vector<8x32xf32>
    %c0_6 = arith.constant 0 : index
    %c0_7 = arith.constant 0 : index
    %8 = vector.load %arg4[%c0_6, %c0_7] : memref<32x32xf32, #tpu.memory_space<vmem>>, vector<32x32xf32>
    %c0_8 = arith.constant 0 : index
    %c0_9 = arith.constant 0 : index
    %9 = vector.load %arg5[%c0_8, %c0_9] : memref<1x32xf32, #tpu.memory_space<vmem>>, vector<1x32xf32>
    %cst_10 = arith.constant dense<0.000000e+00> : vector<8x32xf32>
    %10 = tpu.matmul %7, %8, %cst_10 {dimension_numbers = #tpu.dot_dimension_numbers<[1], [0], [0], [1], [0, 0, 1, 1], [], []>} : vector<8x32xf32>, vector<32x32xf32>, vector<8x32xf32> -> vector<8x32xf32>
    %11 = vector.broadcast %9 : vector<1x32xf32> to vector<8x32xf32>
    %12 = arith.addf %10, %11 : vector<8x32xf32>
    %cst_11 = arith.constant 0.000000e+00 : f32
    %13 = vector.broadcast %cst_11 : f32 to vector<8x32xf32>
    %14 = arith.maximumf %12, %13 : vector<8x32xf32>
    %c0_12 = arith.constant 0 : index
    %c0_13 = arith.constant 0 : index
    %15 = vector.load %arg6[%c0_12, %c0_13] : memref<32x128xf32, #tpu.memory_space<vmem>>, vector<32x128xf32>
    %c0_14 = arith.constant 0 : index
    %c0_15 = arith.constant 0 : index
    %16 = vector.load %arg7[%c0_14, %c0_15] : memref<1x128xf32, #tpu.memory_space<vmem>>, vector<1x128xf32>
    %cst_16 = arith.constant dense<0.000000e+00> : vector<8x128xf32>
    %17 = tpu.matmul %14, %15, %cst_16 {dimension_numbers = #tpu.dot_dimension_numbers<[1], [0], [0], [1], [0, 0, 1, 1], [], []>} : vector<8x32xf32>, vector<32x128xf32>, vector<8x128xf32> -> vector<8x128xf32>
    %18 = vector.broadcast %16 : vector<1x128xf32> to vector<8x128xf32>
    %19 = arith.addf %17, %18 : vector<8x128xf32>
    %c0_17 = arith.constant 0 : index
    %c0_18 = arith.constant 0 : index
    %20 = vector.load %arg8[%c0_17, %c0_18] : memref<8x128xf32, #tpu.memory_space<vmem>>, vector<8x128xf32>
    tpu.vector_store %arg8[%c0_17, %c0_18], %19 {strides = array<i32>} : memref<8x128xf32, #tpu.memory_space<vmem>>, vector<8x128xf32>,
    return
  }
  func.func @transform_0(%arg0: i32) -> (i32, i32) {
    %c0_i32 = arith.constant 0 : i32
    %c0_i32_0 = arith.constant 0 : i32
    return %arg0, %c0_i32 : i32, i32
  }
  func.func @transform_1(%arg0: i32) -> (i32, i32) {
    %c0_i32 = arith.constant 0 : i32
    %c0_i32_0 = arith.constant 0 : i32
    %c0_i32_1 = arith.constant 0 : i32
    return %c0_i32, %c0_i32_0 : i32, i32
  }
  func.func @transform_2(%arg0: i32) -> (i32, i32) {
    %c0_i32 = arith.constant 0 : i32
    %c0_i32_0 = arith.constant 0 : i32
    %c0_i32_1 = arith.constant 0 : i32
    return %c0_i32, %c0_i32_0 : i32, i32
  }
  func.func @transform_3(%arg0: i32) -> (i32, i32) {
    %c0_i32 = arith.constant 0 : i32
    %c0_i32_0 = arith.constant 0 : i32
    %c0_i32_1 = arith.constant 0 : i32
    return %c0_i32, %c0_i32_0 : i32, i32
  }
  func.func @transform_4(%arg0: i32) -> (i32, i32) {
    %c0_i32 = arith.constant 0 : i32
    %c0_i32_0 = arith.constant 0 : i32
    %c0_i32_1 = arith.constant 0 : i32
    return %c0_i32, %c0_i32_0 : i32, i32
  }
  func.func @transform_5(%arg0: i32) -> (i32, i32) {
    %c0_i32 = arith.constant 0 : i32
    %c0_i32_0 = arith.constant 0 : i32
    %c0_i32_1 = arith.constant 0 : i32
    return %c0_i32, %c0_i32_0 : i32, i32
  }
  func.func @transform_6(%arg0: i32) -> (i32, i32) {
    %c0_i32 = arith.constant 0 : i32
    %c0_i32_0 = arith.constant 0 : i32
    %c0_i32_1 = arith.constant 0 : i32
    return %c0_i32, %c0_i32_0 : i32, i32
  }
  func.func @transform_7(%arg0: i32) -> (i32, i32) {
    %c0_i32 = arith.constant 0 : i32
    %c0_i32_0 = arith.constant 0 : i32
    return %arg0, %c0_i32 : i32, i32
  }
}

</mosaic_0001>

<llo_original>
// kernel: mlp_forward.1
$region0: #{mlp_forward.1}
  #allocation0 [shape = 'u32[]', space=smem, size = 0x4, offset = 0x4, fixed_abs, tag = 'smem constant byte address 0x4 - core index']
  #allocation1 [shape = 'u32[144,128]{1,0:T(1,128)}', space=vmem, size = 0x12000, scoped, tag = 'internal scratch']
  %s0 = inlined_call_operand.vmem [shape: f32[8,2], index: 0, kind: input, shape index: {}]
  %s1 = inlined_call_operand.vmem [shape: f32[2,32], index: 1, kind: input, shape index: {}]
  %s2 = inlined_call_operand.vmem [shape: f32[1,32], index: 2, kind: input, shape index: {}]
  %s3 = inlined_call_operand.vmem [shape: f32[32,32], index: 3, kind: input, shape index: {}]
  %s4 = inlined_call_operand.vmem [shape: f32[1,32], index: 4, kind: input, shape index: {}]
  %s5 = inlined_call_operand.vmem [shape: f32[32,128], index: 5, kind: input, shape index: {}]
  %s6 = inlined_call_operand.vmem [shape: f32[1,128], index: 6, kind: input, shape index: {}]
  %s7 = inlined_call_operand.vmem [shape: f32[8,128], index: 7, kind: output, shape index: {}]
  %s8 = sld [smem:[#allocation0]]
  $region38: #{mlp_forward.1} parent=0
    _
  %s10 = ssub.s32 1, %s8
  %s11 = scalar_select 0, %s10, %s8
  // Predicated region
  $region2: #{mlp_forward.1} parent=0 // pred_check
    _
  $region3: #{mlp_forward.1} parent=0 // pred_check_branch
    %13 = sbr.rel (0) target = $region5
  $region4: #{mlp_forward.1} parent=0 // pred_region
    _
  $region5: #{mlp_forward.1} parent=0 // pred_fallthru
    _
  // Predicated region
  $region6: #{mlp_forward.1} parent=0 // pred_check
    _
  $region7: #{mlp_forward.1} parent=0 // pred_check_branch
    %15 = sbr.rel (0) target = $region9
  $region8: #{mlp_forward.1} parent=0 // pred_region
    _
  $region9: #{mlp_forward.1} parent=0 // pred_fallthru
    _
  // Predicated region
  $region10: #{mlp_forward.1} parent=0 // pred_check
    _
  $region11: #{mlp_forward.1} parent=0 // pred_check_branch
    %17 = sbr.rel (0) target = $region13
  $region12: #{mlp_forward.1} parent=0 // pred_region
    _
  $region13: #{mlp_forward.1} parent=0 // pred_fallthru
    _
  // Predicated region
  $region14: #{mlp_forward.1} parent=0 // pred_check
    _
  $region15: #{mlp_forward.1} parent=0 // pred_check_branch
    %19 = sbr.rel (0) target = $region17
  $region16: #{mlp_forward.1} parent=0 // pred_region
    _
  $region17: #{mlp_forward.1} parent=0 // pred_fallthru
    _
  // Predicated region
  $region18: #{mlp_forward.1} parent=0 // pred_check
    _
  $region19: #{mlp_forward.1} parent=0 // pred_check_branch
    %21 = sbr.rel (0) target = $region21
  $region20: #{mlp_forward.1} parent=0 // pred_region
    _
  $region21: #{mlp_forward.1} parent=0 // pred_fallthru
    _
  // Predicated region
  $region22: #{mlp_forward.1} parent=0 // pred_check
    _
  $region23: #{mlp_forward.1} parent=0 // pred_check_branch
    %23 = sbr.rel (0) target = $region25
  $region24: #{mlp_forward.1} parent=0 // pred_region
    _
  $region25: #{mlp_forward.1} parent=0 // pred_fallthru
    _
  // Predicated region
  $region26: #{mlp_forward.1} parent=0 // pred_check
    _
  $region27: #{mlp_forward.1} parent=0 // pred_check_branch
    %25 = sbr.rel (0) target = $region29
  $region28: #{mlp_forward.1} parent=0 // pred_region
    _
  $region29: #{mlp_forward.1} parent=0 // pred_fallthru
    _
  %v26 = vld [vmem:[%s0] sm:$0xff]
  %v27 = vld [vmem:[%s1] sm:$0x3]
  %v28 = vld [vmem:[%s2] sm:$0x1]
  %v30 = vlaneseq
  %v31 = vshrl.u32 %v30, 7
  %v32 = vsub.s32 0, %v31
  %v33 = vrot.slane %v28, %v32
  %vm35 = vcmask 15360
  %v37 = vsel %vm35, %v26, 0
  %vm39 = vcmask 1041408
  %v41 = vsel %vm39, %v27, 0
  %43 = vmatprep.subr.mxu0 0.0
  %44 = vmatpush1.msra.mxu0 0.0
  %45 = vmatprep.subr.mxu0 0.0
  %46 = vmatpush1.msra.mxu0 0.0
  %47 = vmatprep.subr.mxu0 0.0
  %48 = vmatpush1.msra.mxu0 0.0
  %49 = vmatprep.subr.mxu0 0.0
  %50 = vmatpush1.msra.mxu0 0.0
  %51 = vmatprep.subr.mxu0 0.0
  %52 = vmatpush1.msra.mxu0 0.0
  %53 = vmatprep.subr.mxu0 0.0
  %54 = vmatpush1.msra.mxu0 0.0
  %55 = vmatprep.subr.mxu0 0.0
  %56 = vmatpush1.msra.mxu0 0.0
  %57 = vmatprep.subr.mxu0 0.0
  %58 = vmatpush1.msra.mxu0 0.0
  %59 = vmatprep.subr.mxu0 0.0
  %60 = vmatpush1.msra.mxu0 0.0
  %61 = vmatprep.subr.mxu0 0.0
  %62 = vmatpush1.msra.mxu0 0.0
  %63 = vmatprep.subr.mxu0 0.0
  %64 = vmatpush1.msra.mxu0 0.0
  %65 = vmatprep.subr.mxu0 0.0
  %66 = vmatpush1.msra.mxu0 0.0
  %67 = vmatprep.subr.mxu0 0.0
  %68 = vmatpush1.msra.mxu0 0.0
  %69 = vmatprep.subr.mxu0 0.0
  %70 = vmatpush1.msra.mxu0 0.0
  %71 = vmatprep.subr.mxu0 0.0
  %72 = vmatpush1.msra.mxu0 0.0
  %73 = vmatprep.subr.mxu0 0.0
  %74 = vmatpush1.msra.mxu0 %v41
  %75 = vmatprep.subr.mxu0 0.0
  %76 = vmatpush2.msra.mxu0 0.0
  %77 = vmatprep.subr.mxu0 0.0
  %78 = vmatpush2.msra.mxu0 0.0
  %79 = vmatprep.subr.mxu0 0.0
  %80 = vmatpush2.msra.mxu0 0.0
  %81 = vmatprep.subr.mxu0 0.0
  %82 = vmatpush2.msra.mxu0 0.0
  %83 = vmatprep.subr.mxu0 0.0
  %84 = vmatpush2.msra.mxu0 0.0
  %85 = vmatprep.subr.mxu0 0.0
  %86 = vmatpush2.msra.mxu0 0.0
  %87 = vmatprep.subr.mxu0 0.0
  %88 = vmatpush2.msra.mxu0 0.0
  %89 = vmatprep.subr.mxu0 0.0
  %90 = vmatpush2.msra.mxu0 0.0
  %91 = vmatprep.subr.mxu0 0.0
  %92 = vmatpush2.msra.mxu0 0.0
  %93 = vmatprep.subr.mxu0 0.0
  %94 = vmatpush2.msra.mxu0 0.0
  %95 = vmatprep.subr.mxu0 0.0
  %96 = vmatpush2.msra.mxu0 0.0
  %97 = vmatprep.subr.mxu0 0.0
  %98 = vmatpush2.msra.mxu0 0.0
  %99 = vmatprep.subr.mxu0 0.0
  %100 = vmatpush2.msra.mxu0 0.0
  %101 = vmatprep.subr.mxu0 0.0
  %102 = vmatpush2.msra.mxu0 0.0
  %103 = vmatprep.subr.mxu0 0.0
  %104 = vmatpush2.msra.mxu0 0.0
  %105 = vmatprep.subr.mxu0 0.0
  %106 = vmatpush2.msra.mxu0 0.0
  %107 = vmatprep.mubr.f32.mxu0 0.0
  %108 = vmatmul.mubr.f32.gmra.mxu0 %v37
  %v109 = vpop.f32.mrf.mxu0
  %v110 = vadd.f32 %v33, %v109
  %v111 = vpop.f32.mrf.mxu0
  %112 = vdwg.mxu0
  %v113 = vmax.f32 %v110, 0.0
  %v114 = vld [vmem:[%s3] sm:$0xff]
  %v115 = vld [vmem:[%s3 + $0x8] sm:$0xff]
  %v116 = vld [vmem:[%s3 + $0x10] sm:$0xff]
  %v117 = vld [vmem:[%s3 + $0x18] sm:$0xff]
  %v118 = vld [vmem:[%s4] sm:$0x1]
  %v120 = vlaneseq
  %v121 = vshrl.u32 %v120, 7
  %v122 = vsub.s32 0, %v121
  %v123 = vrot.slane %v118, %v122
  %vm125 = vcmask 261120
  %v127 = vsel %vm125, %v113, 0
  %129 = vmatprep.subr.mxu0 0.0
  %130 = vmatpush1.msra.mxu0 0.0
  %131 = vmatprep.subr.mxu0 0.0
  %132 = vmatpush1.msra.mxu0 0.0
  %133 = vmatprep.subr.mxu0 0.0
  %134 = vmatpush1.msra.mxu0 0.0
  %135 = vmatprep.subr.mxu0 0.0
  %136 = vmatpush1.msra.mxu0 0.0
  %137 = vmatprep.subr.mxu0 0.0
  %138 = vmatpush1.msra.mxu0 0.0
  %139 = vmatprep.subr.mxu0 0.0
  %140 = vmatpush1.msra.mxu0 0.0
  %141 = vmatprep.subr.mxu0 0.0
  %142 = vmatpush1.msra.mxu0 0.0
  %143 = vmatprep.subr.mxu0 0.0
  %144 = vmatpush1.msra.mxu0 0.0
  %145 = vmatprep.subr.mxu0 0.0
  %146 = vmatpush1.msra.mxu0 0.0
  %147 = vmatprep.subr.mxu0 0.0
  %148 = vmatpush1.msra.mxu0 0.0
  %149 = vmatprep.subr.mxu0 0.0
  %150 = vmatpush1.msra.mxu0 0.0
  %151 = vmatprep.subr.mxu0 0.0
  %152 = vmatpush1.msra.mxu0 0.0
  %153 = vmatprep.subr.mxu0 0.0
  %154 = vmatpush1.msra.mxu0 %v117
  %155 = vmatprep.subr.mxu0 0.0
  %156 = vmatpush1.msra.mxu0 %v116
  %157 = vmatprep.subr.mxu0 0.0
  %158 = vmatpush1.msra.mxu0 %v115
  %159 = vmatprep.subr.mxu0 0.0
  %160 = vmatpush1.msra.mxu0 %v114
  %161 = vmatprep.subr.mxu0 0.0
  %162 = vmatpush2.msra.mxu0 0.0
  %163 = vmatprep.subr.mxu0 0.0
  %164 = vmatpush2.msra.mxu0 0.0
  %165 = vmatprep.subr.mxu0 0.0
  %166 = vmatpush2.msra.mxu0 0.0
  %167 = vmatprep.subr.mxu0 0.0
  %168 = vmatpush2.msra.mxu0 0.0
  %169 = vmatprep.subr.mxu0 0.0
  %170 = vmatpush2.msra.mxu0 0.0
  %171 = vmatprep.subr.mxu0 0.0
  %172 = vmatpush2.msra.mxu0 0.0
  %173 = vmatprep.subr.mxu0 0.0
  %174 = vmatpush2.msra.mxu0 0.0
  %175 = vmatprep.subr.mxu0 0.0
  %176 = vmatpush2.msra.mxu0 0.0
  %177 = vmatprep.subr.mxu0 0.0
  %178 = vmatpush2.msra.mxu0 0.0
  %179 = vmatprep.subr.mxu0 0.0
  %180 = vmatpush2.msra.mxu0 0.0
  %181 = vmatprep.subr.mxu0 0.0
  %182 = vmatpush2.msra.mxu0 0.0
  %183 = vmatprep.subr.mxu0 0.0
  %184 = vmatpush2.msra.mxu0 0.0
  %185 = vmatprep.subr.mxu0 0.0
  %186 = vmatpush2.msra.mxu0 0.0
  %187 = vmatprep.subr.mxu0 0.0
  %188 = vmatpush2.msra.mxu0 0.0
  %189 = vmatprep.subr.mxu0 0.0
  %190 = vmatpush2.msra.mxu0 0.0
  %191 = vmatprep.subr.mxu0 0.0
  %192 = vmatpush2.msra.mxu0 0.0
  %193 = vmatprep.mubr.f32.mxu0 0.0
  %194 = vmatmul.mubr.f32.gmra.mxu0 %v127
  %v195 = vpop.f32.mrf.mxu0
  %v196 = vadd.f32 %v123, %v195
  %v197 = vpop.f32.mrf.mxu0
  %198 = vdwg.mxu0
  %v199 = vmax.f32 %v196, 0.0
  %v200 = vld [vmem:[%s5] sm:$0xff]
  %v201 = vld [vmem:[%s5 + $0x8] sm:$0xff]
  %v202 = vld [vmem:[%s5 + $0x10] sm:$0xff]
  %v203 = vld [vmem:[%s5 + $0x18] sm:$0xff]
  %v204 = vld [vmem:[%s6] sm:$0x1]
  %v206 = vlaneseq
  %v207 = vshrl.u32 %v206, 7
  %v208 = vsub.s32 0, %v207
  %v209 = vrot.slane %v204, %v208
  %v212 = vsel %vm125, %v199, 0
  %214 = vmatprep.subr.mxu0 0.0
  %215 = vmatpush1.msra.mxu0 0.0
  %216 = vmatprep.subr.mxu0 0.0
  %217 = vmatpush1.msra.mxu0 0.0
  %218 = vmatprep.subr.mxu0 0.0
  %219 = vmatpush1.msra.mxu0 0.0
  %220 = vmatprep.subr.mxu0 0.0
  %221 = vmatpush1.msra.mxu0 0.0
  %222 = vmatprep.subr.mxu0 0.0
  %223 = vmatpush1.msra.mxu0 0.0
  %224 = vmatprep.subr.mxu0 0.0
  %225 = vmatpush1.msra.mxu0 0.0
  %226 = vmatprep.subr.mxu0 0.0
  %227 = vmatpush1.msra.mxu0 0.0
  %228 = vmatprep.subr.mxu0 0.0
  %229 = vmatpush1.msra.mxu0 0.0
  %230 = vmatprep.subr.mxu0 0.0
  %231 = vmatpush1.msra.mxu0 0.0
  %232 = vmatprep.subr.mxu0 0.0
  %233 = vmatpush1.msra.mxu0 0.0
  %234 = vmatprep.subr.mxu0 0.0
  %235 = vmatpush1.msra.mxu0 0.0
  %236 = vmatprep.subr.mxu0 0.0
  %237 = vmatpush1.msra.mxu0 0.0
  %238 = vmatprep.subr.mxu0 0.0
  %239 = vmatpush1.msra.mxu0 %v203
  %240 = vmatprep.subr.mxu0 0.0
  %241 = vmatpush1.msra.mxu0 %v202
  %242 = vmatprep.subr.mxu0 0.0
  %243 = vmatpush1.msra.mxu0 %v201
  %244 = vmatprep.subr.mxu0 0.0
  %245 = vmatpush1.msra.mxu0 %v200
  %246 = vmatprep.subr.mxu0 0.0
  %247 = vmatpush2.msra.mxu0 0.0
  %248 = vmatprep.subr.mxu0 0.0
  %249 = vmatpush2.msra.mxu0 0.0
  %250 = vmatprep.subr.mxu0 0.0
  %251 = vmatpush2.msra.mxu0 0.0
  %252 = vmatprep.subr.mxu0 0.0
  %253 = vmatpush2.msra.mxu0 0.0
  %254 = vmatprep.subr.mxu0 0.0
  %255 = vmatpush2.msra.mxu0 0.0
  %256 = vmatprep.subr.mxu0 0.0
  %257 = vmatpush2.msra.mxu0 0.0
  %258 = vmatprep.subr.mxu0 0.0
  %259 = vmatpush2.msra.mxu0 0.0
  %260 = vmatprep.subr.mxu0 0.0
  %261 = vmatpush2.msra.mxu0 0.0
  %262 = vmatprep.subr.mxu0 0.0
  %263 = vmatpush2.msra.mxu0 0.0
  %264 = vmatprep.subr.mxu0 0.0
  %265 = vmatpush2.msra.mxu0 0.0
  %266 = vmatprep.subr.mxu0 0.0
  %267 = vmatpush2.msra.mxu0 0.0
  %268 = vmatprep.subr.mxu0 0.0
  %269 = vmatpush2.msra.mxu0 0.0
  %270 = vmatprep.subr.mxu0 0.0
  %271 = vmatpush2.msra.mxu0 0.0
  %272 = vmatprep.subr.mxu0 0.0
  %273 = vmatpush2.msra.mxu0 0.0
  %274 = vmatprep.subr.mxu0 0.0
  %275 = vmatpush2.msra.mxu0 0.0
  %276 = vmatprep.subr.mxu0 0.0
  %277 = vmatpush2.msra.mxu0 0.0
  %278 = vmatprep.mubr.f32.mxu0 0.0
  %279 = vmatmul.mubr.f32.gmra.mxu0 %v212
  %v280 = vpop.f32.mrf.mxu0
  %v281 = vadd.f32 %v209, %v280
  %v282 = vpop.f32.mrf.mxu0
  %283 = vdwg.mxu0
  %284 = vst [vmem:[%s7] sm:$0xff] %v281
  // Predicated region
  $region30: #{mlp_forward.1} parent=0 // pred_check
    _
  $region31: #{mlp_forward.1} parent=0 // pred_check_branch
    %286 = sbr.rel (0) target = $region33
  $region32: #{mlp_forward.1} parent=0 // pred_region
    _
  $region33: #{mlp_forward.1} parent=0 // pred_fallthru
    _
  // Predicated region
  $region34: #{mlp_forward.1} parent=0 // pred_check
    _
  $region35: #{mlp_forward.1} parent=0 // pred_check_branch
    %288 = sbr.rel (0) target = $region37
  $region36: #{mlp_forward.1} parent=0 // pred_region
    _
  $region37: #{mlp_forward.1} parent=0 // pred_fallthru
    _

</llo_original>
